<compile_context>
chip_gen: v6e
topology: v6e:2x2x1
jax: 0.10.0
libtpu: 0.0.40
codegen_flags: <defaults>
</compile_context>

<pallas_src>
import functools

import jax
import jax.numpy as jnp
from jax.experimental import pallas as pl
from jax.experimental.pallas import tpu as pltpu

_HIGHEST = jax.lax.Precision.HIGHEST


# --------------------------- grouping glue (plain JAX) ---------------------------

def farthest_point_sample(xyz, npoint):
    """xyz: [B, N, 3] -> centroid indices [B, npoint].
    TODO(synk): deterministic first centroid (index 0); the PyTorch reference
    uses a random first centroid, so FPS picks can differ from a torch run."""
    B, N, _ = xyz.shape

    def body(i, state):
        distance, farthest, centroids = state
        centroids = centroids.at[:, i].set(farthest)
        centroid = jnp.take_along_axis(xyz, farthest[:, None, None], axis=1)  # [B,1,3]
        dist = jnp.sum((xyz - centroid) ** 2, axis=-1)                        # [B,N]
        distance = jnp.minimum(distance, dist)
        farthest = jnp.argmax(distance, axis=-1).astype(jnp.int32)
        return distance, farthest, centroids

    distance = jnp.full((B, N), 1e10, jnp.float32)
    farthest = jnp.zeros((B,), jnp.int32)
    centroids = jnp.zeros((B, npoint), jnp.int32)
    _, _, centroids = jax.lax.fori_loop(0, npoint, body, (distance, farthest, centroids))
    return centroids


def index_points(points, idx):
    """points: [B, N, C], idx: [B, ...] int -> gathered [B, ..., C]."""
    B = points.shape[0]
    flat = idx.reshape(B, -1)
    out = jnp.take_along_axis(points, flat[..., None], axis=1)
    return out.reshape(idx.shape + (points.shape[-1],))


def query_ball_point(radius, nsample, xyz, new_xyz):
    B, N, _ = xyz.shape
    S = new_xyz.shape[1]
    sqrdists = jnp.sum((new_xyz[:, :, None, :] - xyz[:, None, :, :]) ** 2, axis=-1)  # [B,S,N]
    group_idx = jnp.broadcast_to(jnp.arange(N, dtype=jnp.int32), (B, S, N))
    group_idx = jnp.where(sqrdists > radius ** 2, jnp.int32(N), group_idx)
    # nsample smallest indices in ascending order == sort()[..., :nsample],
    # done with a partial top-k selection instead of a full O(N log N) sort.
    group_idx = -jax.lax.top_k(-group_idx, nsample)[0]
    group_first = jnp.broadcast_to(group_idx[:, :, :1], (B, S, nsample))
    group_idx = jnp.where(group_idx == N, group_first, group_idx)
    # Safety clamp against OOB gathers (the sentinel N cannot normally survive:
    # a centroid is always its own in-radius neighbor).
    group_idx = jnp.minimum(group_idx, jnp.int32(N - 1))
    return group_idx


def sample_and_group_indices(npoint, radius, nsample, xyz):
    """Returns (new_xyz [B,S,3], neighbor indices idx [B,S,K]) — deterministic."""
    new_xyz = index_points(xyz, farthest_point_sample(xyz, npoint))
    idx = query_ball_point(radius, nsample, xyz, new_xyz)
    return new_xyz, idx


# --------------------------- Pallas kernel (hot path) ---------------------------

def _sa_mlp_kernel(x_ref, w2_ref, b2_ref, o_ref, *, nsample):
    """Per tile: layer-1 ReLU + layer-2 (Conv1x1 + folded BN + ReLU) + max-pool.

    x_ref : (tile_g*nsample, H1) bf16   layer-1 pre-activations (conv1 + folded
            BN bias + centroid correction already applied), rows-major
            (group, neighbor) so consecutive `nsample` rows form one group.
    w2_ref: (H1, H2p) bf16 ; b2_ref: (1, H2p) f32  (H2p = 128-multiple)
    o_ref : (tile_g, H2p) f32
    """
    rows = x_ref.shape[0]
    tile_g = rows // nsample

    # Layer-1 ReLU on the VPU (bf16); result feeds the MXU directly.
    h = jnp.maximum(x_ref[...], jnp.zeros((), x_ref.dtype))

    # Layer 2: bf16 MXU operands, f32 accumulate; bias/ReLU in f32.
    h = jnp.dot(h, w2_ref[...], preferred_element_type=jnp.float32)
    h = jnp.maximum(h + b2_ref[...], 0.0)                     # (rows, H2p) f32

    # Max-pool over the neighborhood: sublane-split reshape (nsample % 8 == 0)
    # is layout-preserving, then the reduction over the split axis.
    o_ref[...] = jnp.max(h.reshape(tile_g, nsample, h.shape[-1]), axis=1)


def _round_up(x, m):
    return ((x + m - 1) // m) * m


@functools.lru_cache(maxsize=None)
def _vmem_capacity_bytes():
    try:
        return int(pltpu.get_tpu_info().vmem_capacity_bytes)
    except Exception:
        return 64 * 1024 * 1024   # v7x has the smallest per-core VMEM; be conservative


def _kernel_vmem_bytes(tile_g, k_pad, h1, h2p):
    """Rough per-step VMEM footprint: double-buffered in/out blocks, weights,
    and the layer-2 f32 intermediates."""
    rows = tile_g * k_pad
    x_blocks = 2 * rows * h1 * 2                 # bf16 input block, 2 pipeline buffers
    o_blocks = 2 * tile_g * h2p * 4              # f32 output block, 2 pipeline buffers
    w_blocks = 2 * (h1 * h2p * 2 + h2p * 4)      # w2 (bf16) + b2 (f32), default 2 buffers
    interm = rows * h2p * 4 + rows * h1 * 2      # layer-2 f32 result + relu'd bf16 copy
    return x_blocks + o_blocks + w_blocks + interm


def sa_mlp_pallas(pre1_groups, w2, b2, *, tile_g=None):
    """pre1_groups: [G, K, H1] f32 layer-1 pre-activations -> pooled [G, H2] f32."""
    G, K, H1 = pre1_groups.shape
    H2 = w2.shape[1]

    # Pad the neighborhood K to sublane granularity by replicating the last
    # neighbor: max-pooling is invariant to duplicates.
    K_pad = _round_up(K, 8)
    if K_pad != K:
        pre1_groups = jnp.pad(pre1_groups, ((0, 0), (0, K_pad - K), (0, 0)), mode="edge")

    # Pad output channels to a 128 multiple so every output store is lane-dense.
    # Zero weights/bias -> padded channels are exactly 0 after ReLU; sliced off.
    H2p = _round_up(H2, 128)
    if H2p != H2:
        w2 = jnp.pad(w2, ((0, 0), (0, H2p - H2)))
        b2 = jnp.pad(b2, ((0, 0), (0, H2p - H2)))

    # Tile size: tile_rows (matmul M) in ~[512, 2048], >= ~8 grid steps when G
    # allows (so both v7x TensorCores get several pipelined steps), always a
    # multiple of 8 (f32 output-block sublane rule), within the VMEM budget.
    if tile_g is None:
        lo = pl.cdiv(512, K_pad)
        hi = max(lo, 2048 // K_pad)
        tile_g = min(hi, max(lo, G // 8))
    tile_g = max(8, _round_up(tile_g, 8))
    tile_g = min(tile_g, _round_up(G, 8))
    vmem_cap = _vmem_capacity_bytes()
    while tile_g > 8 and _kernel_vmem_bytes(tile_g, K_pad, H1, H2p) > vmem_cap // 2:
        tile_g -= 8

    # Pad G up to a multiple of tile_g (dummy zero groups, sliced off after).
    Gp = _round_up(G, tile_g)
    if Gp != G:
        pre1_groups = jnp.pad(pre1_groups, ((0, Gp - G), (0, 0), (0, 0)))

    rows = Gp * K_pad
    tile_rows = tile_g * K_pad
    grid = (Gp // tile_g,)

    # Rows-major flat layout, flattened in the wrapper (free in XLA); bf16
    # halves input DMA bytes and is the MXU operand dtype anyway.
    x2d = pre1_groups.reshape(rows, H1).astype(jnp.bfloat16)
    w2 = w2.astype(jnp.bfloat16)
    b2 = b2.astype(jnp.float32)

    vmem_limit = int(min(vmem_cap * 3 // 4,
                         max(32 * 1024 * 1024,
                             2 * _kernel_vmem_bytes(tile_g, K_pad, H1, H2p))))

    out = pl.pallas_call(
        functools.partial(_sa_mlp_kernel, nsample=K_pad),
        out_shape=jax.ShapeDtypeStruct((Gp, H2p), jnp.float32),
        grid_spec=pltpu.PrefetchScalarGridSpec(
            num_scalar_prefetch=0,
            grid=grid,
            in_specs=[
                pl.BlockSpec((tile_rows, H1), lambda i: (i, 0)),
                pl.BlockSpec((H1, H2p), lambda i: (0, 0)),
                pl.BlockSpec((1, H2p), lambda i: (0, 0)),
            ],
            out_specs=pl.BlockSpec((tile_g, H2p), lambda i: (i, 0)),
        ),
        compiler_params=pltpu.CompilerParams(
            dimension_semantics=("parallel",),
            vmem_limit_bytes=vmem_limit,
        ),
    )(x2d, w2, b2)

    if Gp == G and H2p == H2:
        return out
    return out[:G, :H2]


# --------------------------- module forward ---------------------------

def fold_conv_bn(w, b, gamma, beta, mean, var, eps=1e-5):
    """w: [C_out, C_in] (Conv2d 1x1 weight squeezed), b: [C_out].
    Returns channels-last weight [C_in, C_out] and bias [1, C_out] with BN folded."""
    scale = gamma / jnp.sqrt(var + eps)
    w_eff = (w * scale[:, None]).T
    b_eff = (b - mean) * scale + beta
    return w_eff, b_eff[None, :]


def pointnet_set_abstraction_forward(xyz, points, params, *, in_channel, npoint,
                                     radius, nsample, group_all, tile_g=None):
    """xyz: [B, N, 3], points: [B, N, D] or None.
    Returns (new_xyz [B,S,3], new_points [B,S,C_out])."""
    B, N, _ = xyz.shape
    C = in_channel

    # TODO(synk): BatchNorm is applied in eval/inference mode (running stats
    # folded into the conv); PyTorch training-mode batch statistics are not
    # reproduced here.
    w1, b1 = fold_conv_bn(params["w1"], params["b1"], params["g1"], params["be1"],
                          params["m1"], params["v1"])
    w2, b2 = fold_conv_bn(params["w2"], params["b2"], params["g2"], params["be2"],
                          params["m2"], params["v2"])
    H1 = w1.shape[1]

    # ---- layer-1 hoist (linearity): per-point projection, once per point ----
    if points is not None:
        feat = jnp.concatenate([xyz, points], axis=-1)[..., :C]
    else:
        feat = xyz[..., :C]
    phi = jnp.einsum("bnc,ch->bnh", feat.astype(jnp.float32), w1,
                     precision=_HIGHEST)                               # [B,N,H1]

    if group_all:
        new_xyz = jnp.zeros((B, 1, 3), xyz.dtype)
        pre1 = phi[:, None, :, :] + b1                                 # [B,1,N,H1]
    else:
        new_xyz, idx = sample_and_group_indices(npoint, radius, nsample, xyz)
        n_c = min(3, C)   # only the xyz channels are centered around the centroid
        psi = jnp.einsum("bsc,ch->bsh", new_xyz[..., :n_c].astype(jnp.float32),
                         w1[:n_c], precision=_HIGHEST)                 # [B,S,H1]
        pre1 = index_points(phi, idx) - psi[:, :, None, :] + b1        # [B,S,K,H1]

    Bp, S, K, _ = pre1.shape
    feat_out = sa_mlp_pallas(pre1.reshape(Bp * S, K, H1), w2, b2, tile_g=tile_g)
    return new_xyz, feat_out.reshape(Bp, S, -1)


def _mlp_ref(x_groups, w1, b1, w2, b2):
    """Direct (un-hoisted) plain-JAX reference mirroring the kernel precision:
    layer-1 in f32, bf16 MXU operands for layer-2, f32 accumulate / ReLU / max."""
    h = jnp.einsum("gkc,ch->gkh", x_groups.astype(jnp.float32), w1,
                   precision=_HIGHEST) + b1
    h = jnp.maximum(h, 0.0).astype(jnp.bfloat16)
    h = jnp.einsum("gkh,ho->gko", h, w2.astype(jnp.bfloat16),
                   preferred_element_type=jnp.float32) + b2
    h = jnp.maximum(h, 0.0)
    return jnp.max(h, axis=1)


# --------------------------- main ---------------------------

if __name__ == "__main__":
    # Small shapes consistent with the module (defaults: in_channel=3, mlp=[64,128]).
    IN_CHANNEL = 3
    MLP = [64, 128]
    NPOINT = 64
    RADIUS = 10.0
    NSAMPLE = 16
    GROUP_ALL = False

    B, N = 2, 128

    key = jax.random.PRNGKey(0)
    k_xyz, k_w1, k_b1, k_w2, k_b2 = jax.random.split(key, 5)

    xyz = jax.random.normal(k_xyz, (B, N, 3), dtype=jnp.float32)
    points = None  # with in_channel=3 only the normalized xyz channels are used

    H1, H2 = MLP
    params = {
        "w1": 0.2 * jax.random.normal(k_w1, (H1, IN_CHANNEL), jnp.float32),
        "b1": 0.1 * jax.random.normal(k_b1, (H1,), jnp.float32),
        "g1": 1.0 + 0.05 * jnp.arange(H1, dtype=jnp.float32) / H1,
        "be1": 0.01 * jnp.arange(H1, dtype=jnp.float32),
        "m1": 0.02 * jnp.arange(H1, dtype=jnp.float32) / H1,
        "v1": 1.0 + 0.1 * jnp.arange(H1, dtype=jnp.float32) / H1,
        "w2": 0.2 * jax.random.normal(k_w2, (H2, H1), jnp.float32),
        "b2": 0.1 * jax.random.normal(k_b2, (H2,), jnp.float32),
        "g2": 1.0 + 0.05 * jnp.arange(H2, dtype=jnp.float32) / H2,
        "be2": 0.01 * jnp.arange(H2, dtype=jnp.float32),
        "m2": 0.02 * jnp.arange(H2, dtype=jnp.float32) / H2,
        "v2": 1.0 + 0.1 * jnp.arange(H2, dtype=jnp.float32) / H2,
    }

    new_xyz, new_points = pointnet_set_abstraction_forward(
        xyz, points, params,
        in_channel=IN_CHANNEL, npoint=NPOINT, radius=RADIUS,
        nsample=NSAMPLE, group_all=GROUP_ALL)
    jax.block_until_ready((new_xyz, new_points))

    assert new_xyz.shape == (B, NPOINT, 3)
    assert new_points.shape == (B, NPOINT, H2)

    # Cross-check the hoisted + fused Pallas path against a direct reference
    # (recompute the same deterministic grouping, apply the MLP un-hoisted).
    nxz, idx = sample_and_group_indices(NPOINT, RADIUS, NSAMPLE, xyz)
    grouped = index_points(xyz, idx) - nxz[:, :, None, :]
    if points is not None:
        grouped = jnp.concatenate([grouped, index_points(points, idx)], axis=-1)
    grouped = grouped[..., :IN_CHANNEL].reshape(B * NPOINT, NSAMPLE, IN_CHANNEL)
    w1f, b1f = fold_conv_bn(params["w1"], params["b1"], params["g1"], params["be1"],
                            params["m1"], params["v1"])
    w2f, b2f = fold_conv_bn(params["w2"], params["b2"], params["g2"], params["be2"],
                            params["m2"], params["v2"])
    ref = _mlp_ref(grouped, w1f, b1f, w2f, b2f).reshape(B, NPOINT, H2)
    assert jnp.allclose(new_xyz, nxz), "centroid mismatch"
    assert jnp.allclose(new_points, ref, rtol=2e-2, atol=2e-2), "mismatch vs reference"

    print("KERNEL_OK")
</pallas_src>

<mosaic_0001>
module attributes {stable_mosaic.version = 11 : i64} {
  func.func @_sa_mlp_kernel(%arg0: i32, %arg1: memref<512x64xbf16, #tpu.memory_space<vmem>>, %arg2: memref<64x128xbf16, #tpu.memory_space<vmem>>, %arg3: memref<1x128xf32, #tpu.memory_space<vmem>>, %arg4: memref<32x128xf32, #tpu.memory_space<vmem>>) attributes {dimension_semantics = [#tpu.dimension_semantics<parallel>], iteration_bounds = array<i64: 4>, scalar_prefetch = 0 : i64, scratch_operands = 0 : i64, tpu.core_type = #tpu.core_type<tc>, window_params = [{transform_indices = @transform_0, window_bounds = array<i64: 512, 64>}, {pipeline_mode = #tpu.pipeline_mode<synchronous>, transform_indices = @transform_1, window_bounds = array<i64: 64, 128>}, {pipeline_mode = #tpu.pipeline_mode<synchronous>, transform_indices = @transform_2, window_bounds = array<i64: 1, 128>}, {transform_indices = @transform_3, window_bounds = array<i64: 32, 128>}]} {
    %c0 = arith.constant 0 : index
    %c0_0 = arith.constant 0 : index
    %0 = vector.load %arg1[%c0, %c0_0] : memref<512x64xbf16, #tpu.memory_space<vmem>>, vector<512x64xbf16>
    %cst = arith.constant 0.000000e+00 : bf16
    %1 = vector.broadcast %cst : bf16 to vector<512x64xbf16>
    %2 = arith.maximumf %0, %1 : vector<512x64xbf16>
    %c0_1 = arith.constant 0 : index
    %c0_2 = arith.constant 0 : index
    %3 = vector.load %arg2[%c0_1, %c0_2] : memref<64x128xbf16, #tpu.memory_space<vmem>>, vector<64x128xbf16>
    %cst_3 = arith.constant dense<0.000000e+00> : vector<512x128xf32>
    %4 = tpu.matmul %2, %3, %cst_3 {dimension_numbers = #tpu.dot_dimension_numbers<[1], [0], [0], [1], [0, 0, 1, 1], [], []>} : vector<512x64xbf16>, vector<64x128xbf16>, vector<512x128xf32> -> vector<512x128xf32>
    %c0_4 = arith.constant 0 : index
    %c0_5 = arith.constant 0 : index
    %5 = vector.load %arg3[%c0_4, %c0_5] : memref<1x128xf32, #tpu.memory_space<vmem>>, vector<1x128xf32>
    %6 = vector.broadcast %5 : vector<1x128xf32> to vector<512x128xf32>
    %7 = arith.addf %4, %6 : vector<512x128xf32>
    %cst_6 = arith.constant 0.000000e+00 : f32
    %8 = vector.broadcast %cst_6 : f32 to vector<512x128xf32>
    %9 = arith.maximumf %7, %8 : vector<512x128xf32>
    %10 = vector.shape_cast %9 : vector<512x128xf32> to vector<32x16x128xf32>
    %cst_7 = arith.constant dense<0xFF800000> : vector<32x128xf32>
    %11 = vector.multi_reduction <maximumf>, %10, %cst_7 [1] : vector<32x16x128xf32> to vector<32x128xf32>
    %c0_8 = arith.constant 0 : index
    %c0_9 = arith.constant 0 : index
    %12 = vector.load %arg4[%c0_8, %c0_9] : memref<32x128xf32, #tpu.memory_space<vmem>>, vector<32x128xf32>
    tpu.vector_store %arg4[%c0_8, %c0_9], %11 {strides = array<i32>} : memref<32x128xf32, #tpu.memory_space<vmem>>, vector<32x128xf32>,
    return
  }
  func.func @transform_0(%arg0: i32) -> (i32, i32) {
    %c0_i32 = arith.constant 0 : i32
    %c0_i32_0 = arith.constant 0 : i32
    return %arg0, %c0_i32 : i32, i32
  }
  func.func @transform_1(%arg0: i32) -> (i32, i32) {
    %c0_i32 = arith.constant 0 : i32
    %c0_i32_0 = arith.constant 0 : i32
    %c0_i32_1 = arith.constant 0 : i32
    return %c0_i32, %c0_i32_0 : i32, i32
  }
  func.func @transform_2(%arg0: i32) -> (i32, i32) {
    %c0_i32 = arith.constant 0 : i32
    %c0_i32_0 = arith.constant 0 : i32
    %c0_i32_1 = arith.constant 0 : i32
    return %c0_i32, %c0_i32_0 : i32, i32
  }
  func.func @transform_3(%arg0: i32) -> (i32, i32) {
    %c0_i32 = arith.constant 0 : i32
    %c0_i32_0 = arith.constant 0 : i32
    return %arg0, %c0_i32 : i32, i32
  }
}

</mosaic_0001>

<llo_original>
// kernel: tpu_custom_call.1
$region0: #{tpu_custom_call.1}
  #allocation0 [shape = 'u32[]', space=smem, size = 0x4, offset = 0x4, fixed_abs, tag = 'smem constant byte address 0x4 - core index']
  #allocation1 [shape = 'u32[144,128]{1,0:T(1,128)}', space=vmem, size = 0x12000, scoped, tag = 'internal scratch']
  %s0 = inlined_call_operand.vmem [shape: bf16[2048,64], index: 0, kind: input, shape index: {}]
  %s1 = inlined_call_operand.vmem [shape: bf16[64,128], index: 1, kind: input, shape index: {}]
  %s2 = inlined_call_operand.vmem [shape: f32[1,128], index: 2, kind: input, shape index: {}]
  %s3 = inlined_call_operand.hbm [shape: f32[128,128], index: 3, kind: output, shape index: {}]
  %s4 = sld [smem:[#allocation0]]
  $region45: #{tpu_custom_call.1} parent=0
    _
  %s6 = ssub.s32 1, %s4
  %s7 = scalar_select 0, %s6, %s4
  $region1: #{tpu_custom_call.1} parent=0
    #allocation2 [shape = 'u8[32768]{0}', space=vmem, size = 0x8000, scoped, tag = 'output window, operand 0']
    #allocation3 [shape = 's32[2]{0}', space=sflag, size = 0x8, scoped, tag = 'scoped memory for tpu_custom_call.1']
    %8 = vsyncpa [#allocation3], 0
    %s9 = scalar_lea.sflag [#allocation3], 1
    %10 = vsyncpa %s9, 0
    loop: start=0, step=1, limit=6
    $region2: #{tpu_custom_call.1} parent=1 // loop_pre_header
      _
    $region3: #{tpu_custom_call.1} parent=1 // loop_header
      %s12 = sphi 0, %s16
      %p13 = scmp.ge.s32.totalorder %s12, 6
      %s22 = sphi 0, %s24
      %s25 = sphi 0, %s22
      %s26 = sphi 0, %s25
      %s42 = sphi 0, %s26
      %s46 = sphi 0, %s46
      %s48 = sphi 0, %s46
      %s49 = sphi 0, %s48
      %s63 = sphi 0, %s49
      %s67 = sphi 0, %s67
      %s69 = sphi 0, %s67
      %s70 = sphi 0, %s69
      %s84 = sphi 0, %s70
      %s90 = sphi 0, %s92
      %s93 = sphi 0, %s90
      %s94 = sphi 0, %s93
      %s110 = sphi 0, %s94
    $region4: #{tpu_custom_call.1} parent=1 // loop_header_branch
      %15 = sbr.rel (%p13) target = $region8
    $region5: #{tpu_custom_call.1} parent=1 // loop_body
      %s17 = ssub.s32 %s12, 1
      %s18 = ssub.s32 %s12, 2
      %s19 = sadd.s32 %s12, 1
      %s20 = ssub.s32 %s12, %s19
      %p21 = scmp.eq.s32.totalorder %s20, 0
      %s23 = sadd.s32 %s22, 1
      %s24 = scalar_select %p21, %s22, %s23
      %p27 = pneg %p21
      %p28 = scmp.eq.s32.totalorder %s12, 3
      %p29 = por %p27, %p28
      %p30 = scmp.ne.s32.totalorder %s22, %s25
      %p31 = scmp.eq.s32.totalorder %s12, 0
      %p32 = por %p30, %p31
      %p33 = scmp.ne.s32.totalorder %s22, %s25
      %p34 = scmp.eq.s32.totalorder %s17, 3
      %p35 = por %p33, %p34
      %p36 = scmp.ne.s32.totalorder %s25, %s26
      %p37 = scmp.eq.s32.totalorder %s17, 0
      %p38 = por %p36, %p37
      %p39 = scmp.ne.s32.totalorder %s25, %s26
      %p40 = scmp.eq.s32.totalorder %s18, 3
      %p41 = por %p39, %p40
      %p43 = scmp.ne.s32.totalorder %s26, %s42
      %p44 = scmp.eq.s32.totalorder %s18, 0
      %p45 = por %p43, %p44
      %s47 = sadd.s32 %s46, 1
      %p50 = scmp.eq.s32.totalorder %s12, 3
      %p51 = scmp.ne.s32.totalorder %s46, %s48
      %p52 = scmp.eq.s32.totalorder %s12, 0
      %p53 = por %p51, %p52
      %p54 = scmp.ne.s32.totalorder %s46, %s48
      %p55 = scmp.eq.s32.totalorder %s17, 3
      %p56 = por %p54, %p55
      %p57 = scmp.ne.s32.totalorder %s48, %s49
      %p58 = scmp.eq.s32.totalorder %s17, 0
      %p59 = por %p57, %p58
      %p60 = scmp.ne.s32.totalorder %s48, %s49
      %p61 = scmp.eq.s32.totalorder %s18, 3
      %p62 = por %p60, %p61
      %p64 = scmp.ne.s32.totalorder %s49, %s63
      %p65 = scmp.eq.s32.totalorder %s18, 0
      %p66 = por %p64, %p65
      %s68 = sadd.s32 %s67, 1
      %p71 = scmp.eq.s32.totalorder %s12, 3
      %p72 = scmp.ne.s32.totalorder %s67, %s69
      %p73 = scmp.eq.s32.totalorder %s12, 0
      %p74 = por %p72, %p73
      %p75 = scmp.ne.s32.totalorder %s67, %s69
      %p76 = scmp.eq.s32.totalorder %s17, 3
      %p77 = por %p75, %p76
      %p78 = scmp.ne.s32.totalorder %s69, %s70
      %p79 = scmp.eq.s32.totalorder %s17, 0
      %p80 = por %p78, %p79
      %p81 = scmp.ne.s32.totalorder %s69, %s70
      %p82 = scmp.eq.s32.totalorder %s18, 3
      %p83 = por %p81, %p82
      %p85 = scmp.ne.s32.totalorder %s70, %s84
      %p86 = scmp.eq.s32.totalorder %s18, 0
      %p87 = por %p85, %p86
      %s88 = ssub.s32 %s12, %s19
      %p89 = scmp.eq.s32.totalorder %s88, 0
      %s91 = sadd.s32 %s90, 1
      %s92 = scalar_select %p89, %s90, %s91
      %p95 = pneg %p89
      %p96 = scmp.eq.s32.totalorder %s12, 3
      %p97 = por %p95, %p96
      %p98 = scmp.ne.s32.totalorder %s90, %s93
      %p99 = scmp.eq.s32.totalorder %s12, 0
      %p100 = por %p98, %p99
      %p101 = scmp.ne.s32.totalorder %s90, %s93
      %p102 = scmp.eq.s32.totalorder %s17, 3
      %p103 = por %p101, %p102
      %p104 = scmp.ne.s32.totalorder %s93, %s94
      %p105 = scmp.eq.s32.totalorder %s17, 0
      %p106 = por %p104, %p105
      %p107 = scmp.ne.s32.totalorder %s93, %s94
      %p108 = scmp.eq.s32.totalorder %s18, 3
      %p109 = por %p107, %p108
      %p111 = scmp.ne.s32.totalorder %s94, %s110
      %p112 = scmp.eq.s32.totalorder %s18, 0
      %p113 = por %p111, %p112
      %p114 = scmp.le.s32.totalorder 1, %s12
      %p115 = scmp.lt.s32.totalorder %s12, 5
      %p116 = pnand %p114, %p115
      %p117 = pneg %p116
      // Predicated region
      $region9: #{tpu_custom_call.1} parent=5 // pred_check
        _
      $region10: #{tpu_custom_call.1} parent=5 // pred_check_branch
        %119 = sbr.rel (%p116) target = $region12
      $region11: #{tpu_custom_call.1} parent=5 // pred_region
        %s120 = ssub.s32 %s12, 1
        // Predicated region
        $region13: #{tpu_custom_call.1} parent=11 // pred_check
          %p121 = pneg %p59
        $region14: #{tpu_custom_call.1} parent=11 // pred_check_branch
          %123 = sbr.rel (%p121) target = $region16
        $region15: #{tpu_custom_call.1} parent=11 // pred_region
          _
        $region16: #{tpu_custom_call.1} parent=11 // pred_fallthru
          _
        // Predicated region
        $region17: #{tpu_custom_call.1} parent=11 // pred_check
          %p124 = pneg %p80
        $region18: #{tpu_custom_call.1} parent=11 // pred_check_branch
          %126 = sbr.rel (%p124) target = $region20
        $region19: #{tpu_custom_call.1} parent=11 // pred_region
          _
        $region20: #{tpu_custom_call.1} parent=11 // pred_fallthru
          _
      $region12: #{tpu_custom_call.1} parent=5 // pred_fallthru
        _
      %p127 = scmp.lt.s32.totalorder %s12, 4
      // Predicated region
      $region21: #{tpu_custom_call.1} parent=5 // pred_check
        %p128 = pneg %p127
      $region22: #{tpu_custom_call.1} parent=5 // pred_check_branch
        %130 = sbr.rel (%p128) target = $region24
      $region23: #{tpu_custom_call.1} parent=5 // pred_region
        // Predicated region
        $region25: #{tpu_custom_call.1} parent=23 // pred_check
          %p131 = pneg %p32
        $region26: #{tpu_custom_call.1} parent=23 // pred_check_branch
          %133 = sbr.rel (%p131) target = $region28
        $region27: #{tpu_custom_call.1} parent=23 // pred_region
          %s134 = smul.u32 64, %s12
          %p135 = scmp.lt.s32.totalorder %s134, 255
          %s136 = scalar_select %p135, %s134, 255
          %s137 = smul.addr %s136, 4
          %s138 = scalar_lea.vmem %s0, %s137
          %s139 = smul.u32 64, %s12
        $region28: #{tpu_custom_call.1} parent=23 // pred_fallthru
          _
      $region24: #{tpu_custom_call.1} parent=5 // pred_fallthru
        _
      %p140 = scmp.le.s32.totalorder 1, %s12
      %p141 = scmp.lt.s32.totalorder %s12, 5
      %p142 = pnand %p140, %p141
      %p143 = pneg %p142
      // Predicated region
      $region29: #{tpu_custom_call.1} parent=5 // pred_check
        _
      $region30: #{tpu_custom_call.1} parent=5 // pred_check_branch
        %145 = sbr.rel (%p142) target = $region32
      $region31: #{tpu_custom_call.1} parent=5 // pred_region
        %s146 = ssub.s32 %s12, 1
        %s147 = smul.u32 64, %s17
        %p148 = scmp.lt.s32.totalorder %s147, 255
        %s149 = scalar_select %p148, %s147, 255
        %s150 = smul.addr %s149, 4
        %s151 = scalar_lea.vmem %s0, %s150
        %p152 = pneg %p38
        %p153 = pneg %p35
        %p154 = pneg %p59
        %p155 = pneg %p56
        %p156 = pneg %p80
        %p157 = pneg %p77
        %p158 = pneg %p106
        %p159 = pneg %p103
        %s160 = sand.u32 %s93, 1
        %s161 = scalar_lea.sflag [#allocation3], %s160
        %s162 = sand.u32 %s93, 1
        %s163 = smul.addr %s162, 32
        %s164 = scalar_lea.vmem [#allocation2], %s163
        %s165 = smul.u32 64, %s17
        %p166 = scmp.lt.s32.totalorder %s165, 255
        %s167 = scalar_select %p166, %s165, 255
        %s168 = smul.addr %s167, 4
        %s169 = scalar_lea.vmem %s0, %s168
        %s170 = smul.u32 64, %s17
        %s171 = smul.u32 4, %s17
        %v173 = vld [vmem:[%s169] sm:$0xf]
        %v174 = vld [vmem:[%s169 + $0x4] sm:$0xf]
        %v175 = vld [vmem:[%s169 + $0x8] sm:$0xf]
        %v176 = vld [vmem:[%s169 + $0xc] sm:$0xf]
        %v177 = vld [vmem:[%s169 + $0x10] sm:$0xf]
        %v178 = vld [vmem:[%s169 + $0x14] sm:$0xf]
        %v179 = vld [vmem:[%s169 + $0x18] sm:$0xf]
        %v180 = vld [vmem:[%s169 + $0x1c] sm:$0xf]
        %v181 = vld [vmem:[%s169 + $0x20] sm:$0xf]
        %v182 = vld [vmem:[%s169 + $0x24] sm:$0xf]
        %v183 = vld [vmem:[%s169 + $0x28] sm:$0xf]
        %v184 = vld [vmem:[%s169 + $0x2c] sm:$0xf]
        %v185 = vld [vmem:[%s169 + $0x30] sm:$0xf]
        %v186 = vld [vmem:[%s169 + $0x34] sm:$0xf]
        %v187 = vld [vmem:[%s169 + $0x38] sm:$0xf]
        %v188 = vld [vmem:[%s169 + $0x3c] sm:$0xf]
        %v189 = vld [vmem:[%s169 + $0x40] sm:$0xf]
        %v190 = vld [vmem:[%s169 + $0x44] sm:$0xf]
        %v191 = vld [vmem:[%s169 + $0x48] sm:$0xf]
        %v192 = vld [vmem:[%s169 + $0x4c] sm:$0xf]
        %v193 = vld [vmem:[%s169 + $0x50] sm:$0xf]
        %v194 = vld [vmem:[%s169 + $0x54] sm:$0xf]
        %v195 = vld [vmem:[%s169 + $0x58] sm:$0xf]
        %v196 = vld [vmem:[%s169 + $0x5c] sm:$0xf]
        %v197 = vld [vmem:[%s169 + $0x60] sm:$0xf]
        %v198 = vld [vmem:[%s169 + $0x64] sm:$0xf]
        %v199 = vld [vmem:[%s169 + $0x68] sm:$0xf]
        %v200 = vld [vmem:[%s169 + $0x6c] sm:$0xf]
        %v201 = vld [vmem:[%s169 + $0x70] sm:$0xf]
        %v202 = vld [vmem:[%s169 + $0x74] sm:$0xf]
        %v203 = vld [vmem:[%s169 + $0x78] sm:$0xf]
        %v204 = vld [vmem:[%s169 + $0x7c] sm:$0xf]
        %v205 = vld [vmem:[%s169 + $0x80] sm:$0xf]
        %v206 = vld [vmem:[%s169 + $0x84] sm:$0xf]
        %v207 = vld [vmem:[%s169 + $0x88] sm:$0xf]
        %v208 = vld [vmem:[%s169 + $0x8c] sm:$0xf]
        %v209 = vld [vmem:[%s169 + $0x90] sm:$0xf]
        %v210 = vld [vmem:[%s169 + $0x94] sm:$0xf]
        %v211 = vld [vmem:[%s169 + $0x98] sm:$0xf]
        %v212 = vld [vmem:[%s169 + $0x9c] sm:$0xf]
        %v213 = vld [vmem:[%s169 + $0xa0] sm:$0xf]
        %v214 = vld [vmem:[%s169 + $0xa4] sm:$0xf]
        %v215 = vld [vmem:[%s169 + $0xa8] sm:$0xf]
        %v216 = vld [vmem:[%s169 + $0xac] sm:$0xf]
        %v217 = vld [vmem:[%s169 + $0xb0] sm:$0xf]
        %v218 = vld [vmem:[%s169 + $0xb4] sm:$0xf]
        %v219 = vld [vmem:[%s169 + $0xb8] sm:$0xf]
        %v220 = vld [vmem:[%s169 + $0xbc] sm:$0xf]
        %v221 = vld [vmem:[%s169 + $0xc0] sm:$0xf]
        %v222 = vld [vmem:[%s169 + $0xc4] sm:$0xf]
        %v223 = vld [vmem:[%s169 + $0xc8] sm:$0xf]
        %v224 = vld [vmem:[%s169 + $0xcc] sm:$0xf]
        %v225 = vld [vmem:[%s169 + $0xd0] sm:$0xf]
        %v226 = vld [vmem:[%s169 + $0xd4] sm:$0xf]
        %v227 = vld [vmem:[%s169 + $0xd8] sm:$0xf]
        %v228 = vld [vmem:[%s169 + $0xdc] sm:$0xf]
        %v229 = vld [vmem:[%s169 + $0xe0] sm:$0xf]
        %v230 = vld [vmem:[%s169 + $0xe4] sm:$0xf]
        %v231 = vld [vmem:[%s169 + $0xe8] sm:$0xf]
        %v232 = vld [vmem:[%s169 + $0xec] sm:$0xf]
        %v233 = vld [vmem:[%s169 + $0xf0] sm:$0xf]
        %v234 = vld [vmem:[%s169 + $0xf4] sm:$0xf]
        %v235 = vld [vmem:[%s169 + $0xf8] sm:$0xf]
        %v236 = vld [vmem:[%s169 + $0xfc] sm:$0xf]
        %v237 = vmax.bf16 %v173, 0
        %v238 = vmax.bf16 %v174, 0
        %v239 = vmax.bf16 %v175, 0
        %v240 = vmax.bf16 %v176, 0
        %v241 = vmax.bf16 %v177, 0
        %v242 = vmax.bf16 %v178, 0
        %v243 = vmax.bf16 %v179, 0
        %v244 = vmax.bf16 %v180, 0
        %v245 = vmax.bf16 %v181, 0
        %v246 = vmax.bf16 %v182, 0
        %v247 = vmax.bf16 %v183, 0
        %v248 = vmax.bf16 %v184, 0
        %v249 = vmax.bf16 %v185, 0
        %v250 = vmax.bf16 %v186, 0
        %v251 = vmax.bf16 %v187, 0
        %v252 = vmax.bf16 %v188, 0
        %v253 = vmax.bf16 %v189, 0
        %v254 = vmax.bf16 %v190, 0
        %v255 = vmax.bf16 %v191, 0
        %v256 = vmax.bf16 %v192, 0
        %v257 = vmax.bf16 %v193, 0
        %v258 = vmax.bf16 %v194, 0
        %v259 = vmax.bf16 %v195, 0
        %v260 = vmax.bf16 %v196, 0
        %v261 = vmax.bf16 %v197, 0
        %v262 = vmax.bf16 %v198, 0
        %v263 = vmax.bf16 %v199, 0
        %v264 = vmax.bf16 %v200, 0
        %v265 = vmax.bf16 %v201, 0
        %v266 = vmax.bf16 %v202, 0
        %v267 = vmax.bf16 %v203, 0
        %v268 = vmax.bf16 %v204, 0
        %v269 = vmax.bf16 %v205, 0
        %v270 = vmax.bf16 %v206, 0
        %v271 = vmax.bf16 %v207, 0
        %v272 = vmax.bf16 %v208, 0
        %v273 = vmax.bf16 %v209, 0
        %v274 = vmax.bf16 %v210, 0
        %v275 = vmax.bf16 %v211, 0
        %v276 = vmax.bf16 %v212, 0
        %v277 = vmax.bf16 %v213, 0
        %v278 = vmax.bf16 %v214, 0
        %v279 = vmax.bf16 %v215, 0
        %v280 = vmax.bf16 %v216, 0
        %v281 = vmax.bf16 %v217, 0
        %v282 = vmax.bf16 %v218, 0
        %v283 = vmax.bf16 %v219, 0
        %v284 = vmax.bf16 %v220, 0
        %v285 = vmax.bf16 %v221, 0
        %v286 = vmax.bf16 %v222, 0
        %v287 = vmax.bf16 %v223, 0
        %v288 = vmax.bf16 %v224, 0
        %v289 = vmax.bf16 %v225, 0
        %v290 = vmax.bf16 %v226, 0
        %v291 = vmax.bf16 %v227, 0
        %v292 = vmax.bf16 %v228, 0
        %v293 = vmax.bf16 %v229, 0
        %v294 = vmax.bf16 %v230, 0
        %v295 = vmax.bf16 %v231, 0
        %v296 = vmax.bf16 %v232, 0
        %v297 = vmax.bf16 %v233, 0
        %v298 = vmax.bf16 %v234, 0
        %v299 = vmax.bf16 %v235, 0
        %v300 = vmax.bf16 %v236, 0
        %v301 = vld [vmem:[%s1] sm:$0xf]
        %v302 = vld [vmem:[%s1 + $0x4] sm:$0xf]
        %v303 = vld [vmem:[%s1 + $0x8] sm:$0xf]
        %v304 = vld [vmem:[%s1 + $0xc] sm:$0xf]
        %v305 = vld [vmem:[%s1 + $0x10] sm:$0xf]
        %v306 = vld [vmem:[%s1 + $0x14] sm:$0xf]
        %v307 = vld [vmem:[%s1 + $0x18] sm:$0xf]
        %v308 = vld [vmem:[%s1 + $0x1c] sm:$0xf]
        %v309 = vld [vmem:[%s2] sm:$0x1]
        %v311 = vlaneseq
        %v312 = vshrl.u32 %v311, 7
        %v313 = vsub.s32 0, %v312
        %v314 = vrot.slane %v309, %v313
        %v380 = vunpack.c.l.b16 %v237
        %v381 = vunpack.c.l.b16 %v238
        %v382 = vunpack.c.l.b16 %v239
        %v383 = vunpack.c.l.b16 %v240
        %v384 = vunpack.c.l.b16 %v241
        %v385 = vunpack.c.l.b16 %v242
        %v386 = vunpack.c.l.b16 %v243
        %v387 = vunpack.c.l.b16 %v244
        %v388 = vunpack.c.l.b16 %v245
        %v389 = vunpack.c.l.b16 %v246
        %v390 = vunpack.c.l.b16 %v247
        %v391 = vunpack.c.l.b16 %v248
        %v392 = vunpack.c.l.b16 %v249
        %v393 = vunpack.c.l.b16 %v250
        %v394 = vunpack.c.l.b16 %v251
        %v395 = vunpack.c.l.b16 %v252
        %v396 = vunpack.c.l.b16 %v253
        %v397 = vunpack.c.l.b16 %v254
        %v398 = vunpack.c.l.b16 %v255
        %v399 = vunpack.c.l.b16 %v256
        %v400 = vunpack.c.l.b16 %v257
        %v401 = vunpack.c.l.b16 %v258
        %v402 = vunpack.c.l.b16 %v259
        %v403 = vunpack.c.l.b16 %v260
        %v404 = vunpack.c.l.b16 %v261
        %v405 = vunpack.c.l.b16 %v262
        %v406 = vunpack.c.l.b16 %v263
        %v407 = vunpack.c.l.b16 %v264
        %v408 = vunpack.c.l.b16 %v265
        %v409 = vunpack.c.l.b16 %v266
        %v410 = vunpack.c.l.b16 %v267
        %v411 = vunpack.c.l.b16 %v268
        %v412 = vunpack.c.l.b16 %v269
        %v413 = vunpack.c.l.b16 %v270
        %v414 = vunpack.c.l.b16 %v271
        %v415 = vunpack.c.l.b16 %v272
        %v416 = vunpack.c.l.b16 %v273
        %v417 = vunpack.c.l.b16 %v274
        %v418 = vunpack.c.l.b16 %v275
        %v419 = vunpack.c.l.b16 %v276
        %v420 = vunpack.c.l.b16 %v277
        %v421 = vunpack.c.l.b16 %v278
        %v422 = vunpack.c.l.b16 %v279
        %v423 = vunpack.c.l.b16 %v280
        %v424 = vunpack.c.l.b16 %v281
        %v425 = vunpack.c.l.b16 %v282
        %v426 = vunpack.c.l.b16 %v283
        %v427 = vunpack.c.l.b16 %v284
        %v428 = vunpack.c.l.b16 %v285
        %v429 = vunpack.c.l.b16 %v286
        %v430 = vunpack.c.l.b16 %v287
        %v431 = vunpack.c.l.b16 %v288
        %v432 = vunpack.c.l.b16 %v289
        %v433 = vunpack.c.l.b16 %v290
        %v434 = vunpack.c.l.b16 %v291
        %v435 = vunpack.c.l.b16 %v292
        %v436 = vunpack.c.l.b16 %v293
        %v437 = vunpack.c.l.b16 %v294
        %v438 = vunpack.c.l.b16 %v295
        %v439 = vunpack.c.l.b16 %v296
        %v440 = vunpack.c.l.b16 %v297
        %v441 = vunpack.c.l.b16 %v298
        %v442 = vunpack.c.l.b16 %v299
        %v443 = vunpack.c.l.b16 %v300
        %v444 = vpack.c.b16 %v381, %v380
        %v445 = vpack.c.b16 %v383, %v382
        %v446 = vpack.c.b16 %v385, %v384
        %v447 = vpack.c.b16 %v387, %v386
        %v448 = vpack.c.b16 %v389, %v388
        %v449 = vpack.c.b16 %v391, %v390
        %v450 = vpack.c.b16 %v393, %v392
        %v451 = vpack.c.b16 %v395, %v394
        %v452 = vpack.c.b16 %v397, %v396
        %v453 = vpack.c.b16 %v399, %v398
        %v454 = vpack.c.b16 %v401, %v400
        %v455 = vpack.c.b16 %v403, %v402
        %v456 = vpack.c.b16 %v405, %v404
        %v457 = vpack.c.b16 %v407, %v406
        %v458 = vpack.c.b16 %v409, %v408
        %v459 = vpack.c.b16 %v411, %v410
        %v460 = vpack.c.b16 %v413, %v412
        %v461 = vpack.c.b16 %v415, %v414
        %v462 = vpack.c.b16 %v417, %v416
        %v463 = vpack.c.b16 %v419, %v418
        %v464 = vpack.c.b16 %v421, %v420
        %v465 = vpack.c.b16 %v423, %v422
        %v466 = vpack.c.b16 %v425, %v424
        %v467 = vpack.c.b16 %v427, %v426
        %v468 = vpack.c.b16 %v429, %v428
        %v469 = vpack.c.b16 %v431, %v430
        %v470 = vpack.c.b16 %v433, %v432
        %v471 = vpack.c.b16 %v435, %v434
        %v472 = vpack.c.b16 %v437, %v436
        %v473 = vpack.c.b16 %v439, %v438
        %v474 = vpack.c.b16 %v441, %v440
        %v475 = vpack.c.b16 %v443, %v442
        %v484 = vunpack.c.l.b16 %v301
        %v485 = vunpack.c.l.b16 %v302
        %v486 = vunpack.c.l.b16 %v303
        %v487 = vunpack.c.l.b16 %v304
        %v488 = vunpack.c.l.b16 %v305
        %v489 = vunpack.c.l.b16 %v306
        %v490 = vunpack.c.l.b16 %v307
        %v491 = vunpack.c.l.b16 %v308
        %v492 = vpack.c.b16 %v485, %v484
        %v493 = vpack.c.b16 %v487, %v486
        %v494 = vpack.c.b16 %v489, %v488
        %v495 = vpack.c.b16 %v491, %v490
        %vm500 = vcmask 523264
        %v502 = vsel %vm500, %v444, 0
        %v505 = vsel %vm500, %v445, 0
        %v508 = vsel %vm500, %v446, 0
        %v511 = vsel %vm500, %v447, 0
        %v514 = vsel %vm500, %v448, 0
        %v517 = vsel %vm500, %v449, 0
        %v520 = vsel %vm500, %v450, 0
        %v523 = vsel %vm500, %v451, 0
        %v526 = vsel %vm500, %v452, 0
        %v529 = vsel %vm500, %v453, 0
        %v532 = vsel %vm500, %v454, 0
        %v535 = vsel %vm500, %v455, 0
        %v538 = vsel %vm500, %v456, 0
        %v541 = vsel %vm500, %v457, 0
        %v544 = vsel %vm500, %v458, 0
        %v547 = vsel %vm500, %v459, 0
        %v550 = vsel %vm500, %v460, 0
        %v553 = vsel %vm500, %v461, 0
        %v556 = vsel %vm500, %v462, 0
        %v559 = vsel %vm500, %v463, 0
        %v562 = vsel %vm500, %v464, 0
        %v565 = vsel %vm500, %v465, 0
        %v568 = vsel %vm500, %v466, 0
        %v571 = vsel %vm500, %v467, 0
        %v574 = vsel %vm500, %v468, 0
        %v577 = vsel %vm500, %v469, 0
        %v580 = vsel %vm500, %v470, 0
        %v583 = vsel %vm500, %v471, 0
        %v586 = vsel %vm500, %v472, 0
        %v589 = vsel %vm500, %v473, 0
        %v592 = vsel %vm500, %v474, 0
        %v595 = vsel %vm500, %v475, 0
        %597 = vmatprep.subr.bf16.mxu0 0
        %598 = vmatpush1.bf16.msra.mxu0 0
        %599 = vmatprep.subr.bf16.mxu0 0
        %600 = vmatpush1.bf16.msra.mxu0 0
        %601 = vmatprep.subr.bf16.mxu0 0
        %602 = vmatpush1.bf16.msra.mxu0 0
        %603 = vmatprep.subr.bf16.mxu0 0
        %604 = vmatpush1.bf16.msra.mxu0 0
        %605 = vmatprep.subr.bf16.mxu0 0
        %606 = vmatpush1.bf16.msra.mxu0 %v495
        %607 = vmatprep.subr.bf16.mxu0 0
        %608 = vmatpush1.bf16.msra.mxu0 %v494
        %609 = vmatprep.subr.bf16.mxu0 0
        %610 = vmatpush1.bf16.msra.mxu0 %v493
        %611 = vmatprep.subr.bf16.mxu0 0
        %612 = vmatpush1.bf16.msra.mxu0 %v492
        %613 = vmatprep.subr.bf16.mxu0 0
        %614 = vmatpush2.bf16.msra.mxu0 0
        %615 = vmatprep.subr.bf16.mxu0 0
        %616 = vmatpush2.bf16.msra.mxu0 0
        %617 = vmatprep.subr.bf16.mxu0 0
        %618 = vmatpush2.bf16.msra.mxu0 0
        %619 = vmatprep.subr.bf16.mxu0 0
        %620 = vmatpush2.bf16.msra.mxu0 0
        %621 = vmatprep.subr.bf16.mxu0 0
        %622 = vmatpush2.bf16.msra.mxu0 0
        %623 = vmatprep.subr.bf16.mxu0 0
        %624 = vmatpush2.bf16.msra.mxu0 0
        %625 = vmatprep.subr.bf16.mxu0 0
        %626 = vmatpush2.bf16.msra.mxu0 0
        %627 = vmatprep.subr.bf16.mxu0 0
        %628 = vmatpush2.bf16.msra.mxu0 0
        %629 = vmatprep.mubr.bf16.mxu0 0
        %630 = vmatmul.mubr.bf16.gmra.mxu0 %v502
        %v631 = vpop.f32.mrf.mxu0
        %v632 = vadd.f32 %v314, %v631
        %v633 = vpop.f32.mrf.mxu0
        %v634 = vpop.f32.mrf.mxu0
        %v635 = vadd.f32 %v314, %v634
        %v636 = vpop.f32.mrf.mxu0
        %637 = vmatprep.mubr.bf16.mxu0 0
        %638 = vmatmul.mubr.bf16.gmra.mxu0 %v505
        %v639 = vpop.f32.mrf.mxu0
        %v640 = vadd.f32 %v314, %v639
        %v641 = vpop.f32.mrf.mxu0
        %v642 = vpop.f32.mrf.mxu0
        %v643 = vadd.f32 %v314, %v642
        %v644 = vpop.f32.mrf.mxu0
        %645 = vmatprep.mubr.bf16.mxu0 0
        %646 = vmatmul.mubr.bf16.gmra.mxu0 %v508
        %v647 = vpop.f32.mrf.mxu0
        %v648 = vadd.f32 %v314, %v647
        %v649 = vpop.f32.mrf.mxu0
        %v650 = vpop.f32.mrf.mxu0
        %v651 = vadd.f32 %v314, %v650
        %v652 = vpop.f32.mrf.mxu0
        %653 = vmatprep.mubr.bf16.mxu0 0
        %654 = vmatmul.mubr.bf16.gmra.mxu0 %v511
        %v655 = vpop.f32.mrf.mxu0
        %v656 = vadd.f32 %v314, %v655
        %v657 = vpop.f32.mrf.mxu0
        %v658 = vpop.f32.mrf.mxu0
        %v659 = vadd.f32 %v314, %v658
        %v660 = vpop.f32.mrf.mxu0
        %661 = vmatprep.mubr.bf16.mxu0 0
        %662 = vmatmul.mubr.bf16.gmra.mxu0 %v514
        %v663 = vpop.f32.mrf.mxu0
        %v664 = vadd.f32 %v314, %v663
        %v665 = vpop.f32.mrf.mxu0
        %v666 = vpop.f32.mrf.mxu0
        %v667 = vadd.f32 %v314, %v666
        %v668 = vpop.f32.mrf.mxu0
        %669 = vmatprep.mubr.bf16.mxu0 0
        %670 = vmatmul.mubr.bf16.gmra.mxu0 %v517
        %v671 = vpop.f32.mrf.mxu0
        %v672 = vadd.f32 %v314, %v671
        %v673 = vpop.f32.mrf.mxu0
        %v674 = vpop.f32.mrf.mxu0
        %v675 = vadd.f32 %v314, %v674
        %v676 = vpop.f32.mrf.mxu0
        %677 = vmatprep.mubr.bf16.mxu0 0
        %678 = vmatmul.mubr.bf16.gmra.mxu0 %v520
        %v679 = vpop.f32.mrf.mxu0
        %v680 = vadd.f32 %v314, %v679
        %v681 = vpop.f32.mrf.mxu0
        %v682 = vpop.f32.mrf.mxu0
        %v683 = vadd.f32 %v314, %v682
        %v684 = vpop.f32.mrf.mxu0
        %685 = vmatprep.mubr.bf16.mxu0 0
        %686 = vmatmul.mubr.bf16.gmra.mxu0 %v523
        %v687 = vpop.f32.mrf.mxu0
        %v688 = vadd.f32 %v314, %v687
        %v689 = vpop.f32.mrf.mxu0
        %v690 = vpop.f32.mrf.mxu0
        %v691 = vadd.f32 %v314, %v690
        %v692 = vpop.f32.mrf.mxu0
        %693 = vmatprep.mubr.bf16.mxu0 0
        %694 = vmatmul.mubr.bf16.gmra.mxu0 %v526
        %v695 = vpop.f32.mrf.mxu0
        %v696 = vadd.f32 %v314, %v695
        %v697 = vpop.f32.mrf.mxu0
        %v698 = vpop.f32.mrf.mxu0
        %v699 = vadd.f32 %v314, %v698
        %v700 = vpop.f32.mrf.mxu0
        %701 = vmatprep.mubr.bf16.mxu0 0
        %702 = vmatmul.mubr.bf16.gmra.mxu0 %v529
        %v703 = vpop.f32.mrf.mxu0
        %v704 = vadd.f32 %v314, %v703
        %v705 = vpop.f32.mrf.mxu0
        %v706 = vpop.f32.mrf.mxu0
        %v707 = vadd.f32 %v314, %v706
        %v708 = vpop.f32.mrf.mxu0
        %709 = vmatprep.mubr.bf16.mxu0 0
        %710 = vmatmul.mubr.bf16.gmra.mxu0 %v532
        %v711 = vpop.f32.mrf.mxu0
        %v712 = vadd.f32 %v314, %v711
        %v713 = vpop.f32.mrf.mxu0
        %v714 = vpop.f32.mrf.mxu0
        %v715 = vadd.f32 %v314, %v714
        %v716 = vpop.f32.mrf.mxu0
        %717 = vmatprep.mubr.bf16.mxu0 0
        %718 = vmatmul.mubr.bf16.gmra.mxu0 %v535
        %v719 = vpop.f32.mrf.mxu0
        %v720 = vadd.f32 %v314, %v719
        %v721 = vpop.f32.mrf.mxu0
        %v722 = vpop.f32.mrf.mxu0
        %v723 = vadd.f32 %v314, %v722
        %v724 = vpop.f32.mrf.mxu0
        %725 = vmatprep.mubr.bf16.mxu0 0
        %726 = vmatmul.mubr.bf16.gmra.mxu0 %v538
        %v727 = vpop.f32.mrf.mxu0
        %v728 = vadd.f32 %v314, %v727
        %v729 = vpop.f32.mrf.mxu0
        %v730 = vpop.f32.mrf.mxu0
        %v731 = vadd.f32 %v314, %v730
        %v732 = vpop.f32.mrf.mxu0
        %733 = vmatprep.mubr.bf16.mxu0 0
        %734 = vmatmul.mubr.bf16.gmra.mxu0 %v541
        %v735 = vpop.f32.mrf.mxu0
        %v736 = vadd.f32 %v314, %v735
        %v737 = vpop.f32.mrf.mxu0
        %v738 = vpop.f32.mrf.mxu0
        %v739 = vadd.f32 %v314, %v738
        %v740 = vpop.f32.mrf.mxu0
        %741 = vmatprep.mubr.bf16.mxu0 0
        %742 = vmatmul.mubr.bf16.gmra.mxu0 %v544
        %v743 = vpop.f32.mrf.mxu0
        %v744 = vadd.f32 %v314, %v743
        %v745 = vpop.f32.mrf.mxu0
        %v746 = vpop.f32.mrf.mxu0
        %v747 = vadd.f32 %v314, %v746
        %v748 = vpop.f32.mrf.mxu0
        %749 = vmatprep.mubr.bf16.mxu0 0
        %750 = vmatmul.mubr.bf16.gmra.mxu0 %v547
        %v751 = vpop.f32.mrf.mxu0
        %v752 = vadd.f32 %v314, %v751
        %v753 = vpop.f32.mrf.mxu0
        %v754 = vpop.f32.mrf.mxu0
        %v755 = vadd.f32 %v314, %v754
        %v756 = vpop.f32.mrf.mxu0
        %757 = vmatprep.mubr.bf16.mxu0 0
        %758 = vmatmul.mubr.bf16.gmra.mxu0 %v550
        %v759 = vpop.f32.mrf.mxu0
        %v760 = vadd.f32 %v314, %v759
        %v761 = vpop.f32.mrf.mxu0
        %v762 = vpop.f32.mrf.mxu0
        %v763 = vadd.f32 %v314, %v762
        %v764 = vpop.f32.mrf.mxu0
        %765 = vmatprep.mubr.bf16.mxu0 0
        %766 = vmatmul.mubr.bf16.gmra.mxu0 %v553
        %v767 = vpop.f32.mrf.mxu0
        %v768 = vadd.f32 %v314, %v767
        %v769 = vpop.f32.mrf.mxu0
        %v770 = vpop.f32.mrf.mxu0
        %v771 = vadd.f32 %v314, %v770
        %v772 = vpop.f32.mrf.mxu0
        %773 = vmatprep.mubr.bf16.mxu0 0
        %774 = vmatmul.mubr.bf16.gmra.mxu0 %v556
        %v775 = vpop.f32.mrf.mxu0
        %v776 = vadd.f32 %v314, %v775
        %v777 = vpop.f32.mrf.mxu0
        %v778 = vpop.f32.mrf.mxu0
        %v779 = vadd.f32 %v314, %v778
        %v780 = vpop.f32.mrf.mxu0
        %781 = vmatprep.mubr.bf16.mxu0 0
        %782 = vmatmul.mubr.bf16.gmra.mxu0 %v559
        %v783 = vpop.f32.mrf.mxu0
        %v784 = vadd.f32 %v314, %v783
        %v785 = vpop.f32.mrf.mxu0
        %v786 = vpop.f32.mrf.mxu0
        %v787 = vadd.f32 %v314, %v786
        %v788 = vpop.f32.mrf.mxu0
        %789 = vmatprep.mubr.bf16.mxu0 0
        %790 = vmatmul.mubr.bf16.gmra.mxu0 %v562
        %v791 = vpop.f32.mrf.mxu0
        %v792 = vadd.f32 %v314, %v791
        %v793 = vpop.f32.mrf.mxu0
        %v794 = vpop.f32.mrf.mxu0
        %v795 = vadd.f32 %v314, %v794
        %v796 = vpop.f32.mrf.mxu0
        %797 = vmatprep.mubr.bf16.mxu0 0
        %798 = vmatmul.mubr.bf16.gmra.mxu0 %v565
        %v799 = vpop.f32.mrf.mxu0
        %v800 = vadd.f32 %v314, %v799
        %v801 = vpop.f32.mrf.mxu0
        %v802 = vpop.f32.mrf.mxu0
        %v803 = vadd.f32 %v314, %v802
        %v804 = vpop.f32.mrf.mxu0
        %805 = vmatprep.mubr.bf16.mxu0 0
        %806 = vmatmul.mubr.bf16.gmra.mxu0 %v568
        %v807 = vpop.f32.mrf.mxu0
        %v808 = vadd.f32 %v314, %v807
        %v809 = vpop.f32.mrf.mxu0
        %v810 = vpop.f32.mrf.mxu0
        %v811 = vadd.f32 %v314, %v810
        %v812 = vpop.f32.mrf.mxu0
        %813 = vmatprep.mubr.bf16.mxu0 0
        %814 = vmatmul.mubr.bf16.gmra.mxu0 %v571
        %v815 = vpop.f32.mrf.mxu0
        %v816 = vadd.f32 %v314, %v815
        %v817 = vpop.f32.mrf.mxu0
        %v818 = vpop.f32.mrf.mxu0
        %v819 = vadd.f32 %v314, %v818
        %v820 = vpop.f32.mrf.mxu0
        %821 = vmatprep.mubr.bf16.mxu0 0
        %822 = vmatmul.mubr.bf16.gmra.mxu0 %v574
        %v823 = vpop.f32.mrf.mxu0
        %v824 = vadd.f32 %v314, %v823
        %v825 = vpop.f32.mrf.mxu0
        %v826 = vpop.f32.mrf.mxu0
        %v827 = vadd.f32 %v314, %v826
        %v828 = vpop.f32.mrf.mxu0
        %829 = vmatprep.mubr.bf16.mxu0 0
        %830 = vmatmul.mubr.bf16.gmra.mxu0 %v577
        %v831 = vpop.f32.mrf.mxu0
        %v832 = vadd.f32 %v314, %v831
        %v833 = vpop.f32.mrf.mxu0
        %v834 = vpop.f32.mrf.mxu0
        %v835 = vadd.f32 %v314, %v834
        %v836 = vpop.f32.mrf.mxu0
        %837 = vmatprep.mubr.bf16.mxu0 0
        %838 = vmatmul.mubr.bf16.gmra.mxu0 %v580
        %v839 = vpop.f32.mrf.mxu0
        %v840 = vadd.f32 %v314, %v839
        %v841 = vpop.f32.mrf.mxu0
        %v842 = vpop.f32.mrf.mxu0
        %v843 = vadd.f32 %v314, %v842
        %v844 = vpop.f32.mrf.mxu0
        %845 = vmatprep.mubr.bf16.mxu0 0
        %846 = vmatmul.mubr.bf16.gmra.mxu0 %v583
        %v847 = vpop.f32.mrf.mxu0
        %v848 = vadd.f32 %v314, %v847
        %v849 = vpop.f32.mrf.mxu0
        %v850 = vpop.f32.mrf.mxu0
        %v851 = vadd.f32 %v314, %v850
        %v852 = vpop.f32.mrf.mxu0
        %853 = vmatprep.mubr.bf16.mxu0 0
        %854 = vmatmul.mubr.bf16.gmra.mxu0 %v586
        %v855 = vpop.f32.mrf.mxu0
        %v856 = vadd.f32 %v314, %v855
        %v857 = vpop.f32.mrf.mxu0
        %v858 = vpop.f32.mrf.mxu0
        %v859 = vadd.f32 %v314, %v858
        %v860 = vpop.f32.mrf.mxu0
        %861 = vmatprep.mubr.bf16.mxu0 0
        %862 = vmatmul.mubr.bf16.gmra.mxu0 %v589
        %v863 = vpop.f32.mrf.mxu0
        %v864 = vadd.f32 %v314, %v863
        %v865 = vpop.f32.mrf.mxu0
        %v866 = vpop.f32.mrf.mxu0
        %v867 = vadd.f32 %v314, %v866
        %v868 = vpop.f32.mrf.mxu0
        %869 = vmatprep.mubr.bf16.mxu0 0
        %870 = vmatmul.mubr.bf16.gmra.mxu0 %v592
        %v871 = vpop.f32.mrf.mxu0
        %v872 = vadd.f32 %v314, %v871
        %v873 = vpop.f32.mrf.mxu0
        %v874 = vpop.f32.mrf.mxu0
        %v875 = vadd.f32 %v314, %v874
        %v876 = vpop.f32.mrf.mxu0
        %877 = vmatprep.mubr.bf16.mxu0 0
        %878 = vmatmul.mubr.bf16.gmra.mxu0 %v595
        %v879 = vpop.f32.mrf.mxu0
        %v880 = vadd.f32 %v314, %v879
        %v881 = vpop.f32.mrf.mxu0
        %v882 = vpop.f32.mrf.mxu0
        %v883 = vadd.f32 %v314, %v882
        %v884 = vpop.f32.mrf.mxu0
        %885 = vdwg.mxu0
        %v886 = vmax.f32 %v632, 0.0
        %v887 = vmax.f32 %v635, 0.0
        %v888 = vmax.f32 %v640, 0.0
        %v889 = vmax.f32 %v643, 0.0
        %v890 = vmax.f32 %v648, 0.0
        %v891 = vmax.f32 %v651, 0.0
        %v892 = vmax.f32 %v656, 0.0
        %v893 = vmax.f32 %v659, 0.0
        %v894 = vmax.f32 %v664, 0.0
        %v895 = vmax.f32 %v667, 0.0
        %v896 = vmax.f32 %v672, 0.0
        %v897 = vmax.f32 %v675, 0.0
        %v898 = vmax.f32 %v680, 0.0
        %v899 = vmax.f32 %v683, 0.0
        %v900 = vmax.f32 %v688, 0.0
        %v901 = vmax.f32 %v691, 0.0
        %v902 = vmax.f32 %v696, 0.0
        %v903 = vmax.f32 %v699, 0.0
        %v904 = vmax.f32 %v704, 0.0
        %v905 = vmax.f32 %v707, 0.0
        %v906 = vmax.f32 %v712, 0.0
        %v907 = vmax.f32 %v715, 0.0
        %v908 = vmax.f32 %v720, 0.0
        %v909 = vmax.f32 %v723, 0.0
        %v910 = vmax.f32 %v728, 0.0
        %v911 = vmax.f32 %v731, 0.0
        %v912 = vmax.f32 %v736, 0.0
        %v913 = vmax.f32 %v739, 0.0
        %v914 = vmax.f32 %v744, 0.0
        %v915 = vmax.f32 %v747, 0.0
        %v916 = vmax.f32 %v752, 0.0
        %v917 = vmax.f32 %v755, 0.0
        %v918 = vmax.f32 %v760, 0.0
        %v919 = vmax.f32 %v763, 0.0
        %v920 = vmax.f32 %v768, 0.0
        %v921 = vmax.f32 %v771, 0.0
        %v922 = vmax.f32 %v776, 0.0
        %v923 = vmax.f32 %v779, 0.0
        %v924 = vmax.f32 %v784, 0.0
        %v925 = vmax.f32 %v787, 0.0
        %v926 = vmax.f32 %v792, 0.0
        %v927 = vmax.f32 %v795, 0.0
        %v928 = vmax.f32 %v800, 0.0
        %v929 = vmax.f32 %v803, 0.0
        %v930 = vmax.f32 %v808, 0.0
        %v931 = vmax.f32 %v811, 0.0
        %v932 = vmax.f32 %v816, 0.0
        %v933 = vmax.f32 %v819, 0.0
        %v934 = vmax.f32 %v824, 0.0
        %v935 = vmax.f32 %v827, 0.0
        %v936 = vmax.f32 %v832, 0.0
        %v937 = vmax.f32 %v835, 0.0
        %v938 = vmax.f32 %v840, 0.0
        %v939 = vmax.f32 %v843, 0.0
        %v940 = vmax.f32 %v848, 0.0
        %v941 = vmax.f32 %v851, 0.0
        %v942 = vmax.f32 %v856, 0.0
        %v943 = vmax.f32 %v859, 0.0
        %v944 = vmax.f32 %v864, 0.0
        %v945 = vmax.f32 %v867, 0.0
        %v946 = vmax.f32 %v872, 0.0
        %v947 = vmax.f32 %v875, 0.0
        %v948 = vmax.f32 %v880, 0.0
        %v949 = vmax.f32 %v883, 0.0
        %v950 = vmax.f32 %v886, %v887
        %v951 = vrot.slane %v950, 4
        %v952 = vmax.f32 %v950, %v951
        %v953 = vrot.slane %v952, 2
        %v954 = vmax.f32 %v952, %v953
        %v955 = vrot.slane %v954, 1
        %v956 = vmax.f32 %v954, %v955
        %v957 = vmax.f32 %v888, %v889
        %v958 = vrot.slane %v957, 4
        %v959 = vmax.f32 %v957, %v958
        %v960 = vrot.slane %v959, 2
        %v961 = vmax.f32 %v959, %v960
        %v962 = vrot.slane %v961, 1
        %v963 = vmax.f32 %v961, %v962
        %v964 = vmax.f32 %v890, %v891
        %v965 = vrot.slane %v964, 4
        %v966 = vmax.f32 %v964, %v965
        %v967 = vrot.slane %v966, 2
        %v968 = vmax.f32 %v966, %v967
        %v969 = vrot.slane %v968, 1
        %v970 = vmax.f32 %v968, %v969
        %v971 = vmax.f32 %v892, %v893
        %v972 = vrot.slane %v971, 4
        %v973 = vmax.f32 %v971, %v972
        %v974 = vrot.slane %v973, 2
        %v975 = vmax.f32 %v973, %v974
        %v976 = vrot.slane %v975, 1
        %v977 = vmax.f32 %v975, %v976
        %v978 = vmax.f32 %v894, %v895
        %v979 = vrot.slane %v978, 4
        %v980 = vmax.f32 %v978, %v979
        %v981 = vrot.slane %v980, 2
        %v982 = vmax.f32 %v980, %v981
        %v983 = vrot.slane %v982, 1
        %v984 = vmax.f32 %v982, %v983
        %v985 = vmax.f32 %v896, %v897
        %v986 = vrot.slane %v985, 4
        %v987 = vmax.f32 %v985, %v986
        %v988 = vrot.slane %v987, 2
        %v989 = vmax.f32 %v987, %v988
        %v990 = vrot.slane %v989, 1
        %v991 = vmax.f32 %v989, %v990
        %v992 = vmax.f32 %v898, %v899
        %v993 = vrot.slane %v992, 4
        %v994 = vmax.f32 %v992, %v993
        %v995 = vrot.slane %v994, 2
        %v996 = vmax.f32 %v994, %v995
        %v997 = vrot.slane %v996, 1
        %v998 = vmax.f32 %v996, %v997
        %v999 = vmax.f32 %v900, %v901
        %v1000 = vrot.slane %v999, 4
        %v1001 = vmax.f32 %v999, %v1000
        %v1002 = vrot.slane %v1001, 2
        %v1003 = vmax.f32 %v1001, %v1002
        %v1004 = vrot.slane %v1003, 1
        %v1005 = vmax.f32 %v1003, %v1004
        %v1006 = vmax.f32 %v902, %v903
        %v1007 = vrot.slane %v1006, 4
        %v1008 = vmax.f32 %v1006, %v1007
        %v1009 = vrot.slane %v1008, 2
        %v1010 = vmax.f32 %v1008, %v1009
        %v1011 = vrot.slane %v1010, 1
        %v1012 = vmax.f32 %v1010, %v1011
        %v1013 = vmax.f32 %v904, %v905
        %v1014 = vrot.slane %v1013, 4
        %v1015 = vmax.f32 %v1013, %v1014
        %v1016 = vrot.slane %v1015, 2
        %v1017 = vmax.f32 %v1015, %v1016
        %v1018 = vrot.slane %v1017, 1
        %v1019 = vmax.f32 %v1017, %v1018
        %v1020 = vmax.f32 %v906, %v907
        %v1021 = vrot.slane %v1020, 4
        %v1022 = vmax.f32 %v1020, %v1021
        %v1023 = vrot.slane %v1022, 2
        %v1024 = vmax.f32 %v1022, %v1023
        %v1025 = vrot.slane %v1024, 1
        %v1026 = vmax.f32 %v1024, %v1025
        %v1027 = vmax.f32 %v908, %v909
        %v1028 = vrot.slane %v1027, 4
        %v1029 = vmax.f32 %v1027, %v1028
        %v1030 = vrot.slane %v1029, 2
        %v1031 = vmax.f32 %v1029, %v1030
        %v1032 = vrot.slane %v1031, 1
        %v1033 = vmax.f32 %v1031, %v1032
        %v1034 = vmax.f32 %v910, %v911
        %v1035 = vrot.slane %v1034, 4
        %v1036 = vmax.f32 %v1034, %v1035
        %v1037 = vrot.slane %v1036, 2
        %v1038 = vmax.f32 %v1036, %v1037
        %v1039 = vrot.slane %v1038, 1
        %v1040 = vmax.f32 %v1038, %v1039
        %v1041 = vmax.f32 %v912, %v913
        %v1042 = vrot.slane %v1041, 4
        %v1043 = vmax.f32 %v1041, %v1042
        %v1044 = vrot.slane %v1043, 2
        %v1045 = vmax.f32 %v1043, %v1044
        %v1046 = vrot.slane %v1045, 1
        %v1047 = vmax.f32 %v1045, %v1046
        %v1048 = vmax.f32 %v914, %v915
        %v1049 = vrot.slane %v1048, 4
        %v1050 = vmax.f32 %v1048, %v1049
        %v1051 = vrot.slane %v1050, 2
        %v1052 = vmax.f32 %v1050, %v1051
        %v1053 = vrot.slane %v1052, 1
        %v1054 = vmax.f32 %v1052, %v1053
        %v1055 = vmax.f32 %v916, %v917
        %v1056 = vrot.slane %v1055, 4
        %v1057 = vmax.f32 %v1055, %v1056
        %v1058 = vrot.slane %v1057, 2
        %v1059 = vmax.f32 %v1057, %v1058
        %v1060 = vrot.slane %v1059, 1
        %v1061 = vmax.f32 %v1059, %v1060
        %v1062 = vmax.f32 %v918, %v919
        %v1063 = vrot.slane %v1062, 4
        %v1064 = vmax.f32 %v1062, %v1063
        %v1065 = vrot.slane %v1064, 2
        %v1066 = vmax.f32 %v1064, %v1065
        %v1067 = vrot.slane %v1066, 1
        %v1068 = vmax.f32 %v1066, %v1067
        %v1069 = vmax.f32 %v920, %v921
        %v1070 = vrot.slane %v1069, 4
        %v1071 = vmax.f32 %v1069, %v1070
        %v1072 = vrot.slane %v1071, 2
        %v1073 = vmax.f32 %v1071, %v1072
        %v1074 = vrot.slane %v1073, 1
        %v1075 = vmax.f32 %v1073, %v1074
        %v1076 = vmax.f32 %v922, %v923
        %v1077 = vrot.slane %v1076, 4
        %v1078 = vmax.f32 %v1076, %v1077
        %v1079 = vrot.slane %v1078, 2
        %v1080 = vmax.f32 %v1078, %v1079
        %v1081 = vrot.slane %v1080, 1
        %v1082 = vmax.f32 %v1080, %v1081
        %v1083 = vmax.f32 %v924, %v925
        %v1084 = vrot.slane %v1083, 4
        %v1085 = vmax.f32 %v1083, %v1084
        %v1086 = vrot.slane %v1085, 2
        %v1087 = vmax.f32 %v1085, %v1086
        %v1088 = vrot.slane %v1087, 1
        %v1089 = vmax.f32 %v1087, %v1088
        %v1090 = vmax.f32 %v926, %v927
        %v1091 = vrot.slane %v1090, 4
        %v1092 = vmax.f32 %v1090, %v1091
        %v1093 = vrot.slane %v1092, 2
        %v1094 = vmax.f32 %v1092, %v1093
        %v1095 = vrot.slane %v1094, 1
        %v1096 = vmax.f32 %v1094, %v1095
        %v1097 = vmax.f32 %v928, %v929
        %v1098 = vrot.slane %v1097, 4
        %v1099 = vmax.f32 %v1097, %v1098
        %v1100 = vrot.slane %v1099, 2
        %v1101 = vmax.f32 %v1099, %v1100
        %v1102 = vrot.slane %v1101, 1
        %v1103 = vmax.f32 %v1101, %v1102
        %v1104 = vmax.f32 %v930, %v931
        %v1105 = vrot.slane %v1104, 4
        %v1106 = vmax.f32 %v1104, %v1105
        %v1107 = vrot.slane %v1106, 2
        %v1108 = vmax.f32 %v1106, %v1107
        %v1109 = vrot.slane %v1108, 1
        %v1110 = vmax.f32 %v1108, %v1109
        %v1111 = vmax.f32 %v932, %v933
        %v1112 = vrot.slane %v1111, 4
        %v1113 = vmax.f32 %v1111, %v1112
        %v1114 = vrot.slane %v1113, 2
        %v1115 = vmax.f32 %v1113, %v1114
        %v1116 = vrot.slane %v1115, 1
        %v1117 = vmax.f32 %v1115, %v1116
        %v1118 = vmax.f32 %v934, %v935
        %v1119 = vrot.slane %v1118, 4
        %v1120 = vmax.f32 %v1118, %v1119
        %v1121 = vrot.slane %v1120, 2
        %v1122 = vmax.f32 %v1120, %v1121
        %v1123 = vrot.slane %v1122, 1
        %v1124 = vmax.f32 %v1122, %v1123
        %v1125 = vmax.f32 %v936, %v937
        %v1126 = vrot.slane %v1125, 4
        %v1127 = vmax.f32 %v1125, %v1126
        %v1128 = vrot.slane %v1127, 2
        %v1129 = vmax.f32 %v1127, %v1128
        %v1130 = vrot.slane %v1129, 1
        %v1131 = vmax.f32 %v1129, %v1130
        %v1132 = vmax.f32 %v938, %v939
        %v1133 = vrot.slane %v1132, 4
        %v1134 = vmax.f32 %v1132, %v1133
        %v1135 = vrot.slane %v1134, 2
        %v1136 = vmax.f32 %v1134, %v1135
        %v1137 = vrot.slane %v1136, 1
        %v1138 = vmax.f32 %v1136, %v1137
        %v1139 = vmax.f32 %v940, %v941
        %v1140 = vrot.slane %v1139, 4
        %v1141 = vmax.f32 %v1139, %v1140
        %v1142 = vrot.slane %v1141, 2
        %v1143 = vmax.f32 %v1141, %v1142
        %v1144 = vrot.slane %v1143, 1
        %v1145 = vmax.f32 %v1143, %v1144
        %v1146 = vmax.f32 %v942, %v943
        %v1147 = vrot.slane %v1146, 4
        %v1148 = vmax.f32 %v1146, %v1147
        %v1149 = vrot.slane %v1148, 2
        %v1150 = vmax.f32 %v1148, %v1149
        %v1151 = vrot.slane %v1150, 1
        %v1152 = vmax.f32 %v1150, %v1151
        %v1153 = vmax.f32 %v944, %v945
        %v1154 = vrot.slane %v1153, 4
        %v1155 = vmax.f32 %v1153, %v1154
        %v1156 = vrot.slane %v1155, 2
        %v1157 = vmax.f32 %v1155, %v1156
        %v1158 = vrot.slane %v1157, 1
        %v1159 = vmax.f32 %v1157, %v1158
        %v1160 = vmax.f32 %v946, %v947
        %v1161 = vrot.slane %v1160, 4
        %v1162 = vmax.f32 %v1160, %v1161
        %v1163 = vrot.slane %v1162, 2
        %v1164 = vmax.f32 %v1162, %v1163
        %v1165 = vrot.slane %v1164, 1
        %v1166 = vmax.f32 %v1164, %v1165
        %v1167 = vmax.f32 %v948, %v949
        %v1168 = vrot.slane %v1167, 4
        %v1169 = vmax.f32 %v1167, %v1168
        %v1170 = vrot.slane %v1169, 2
        %v1171 = vmax.f32 %v1169, %v1170
        %v1172 = vrot.slane %v1171, 1
        %v1173 = vmax.f32 %v1171, %v1172
        %vm1206 = vcmask 1041409
        %v1207 = vsel %vm1206, %v963, %v956
        %vm1208 = vcmask 1042434
        %v1209 = vsel %vm1208, %v970, %v1207
        %vm1210 = vcmask 1043459
        %v1211 = vsel %vm1210, %v977, %v1209
        %vm1212 = vcmask 1044484
        %v1213 = vsel %vm1212, %v984, %v1211
        %vm1214 = vcmask 1045509
        %v1215 = vsel %vm1214, %v991, %v1213
        %vm1216 = vcmask 1046534
        %v1217 = vsel %vm1216, %v998, %v1215
        %vm1218 = vcmask 1047559
        %v1219 = vsel %vm1218, %v1005, %v1217
        %v1220 = vsel %vm1206, %v1019, %v1012
        %v1221 = vsel %vm1208, %v1026, %v1220
        %v1222 = vsel %vm1210, %v1033, %v1221
        %v1223 = vsel %vm1212, %v1040, %v1222
        %v1224 = vsel %vm1214, %v1047, %v1223
        %v1225 = vsel %vm1216, %v1054, %v1224
        %v1226 = vsel %vm1218, %v1061, %v1225
        %v1227 = vsel %vm1206, %v1075, %v1068
        %v1228 = vsel %vm1208, %v1082, %v1227
        %v1229 = vsel %vm1210, %v1089, %v1228
        %v1230 = vsel %vm1212, %v1096, %v1229
        %v1231 = vsel %vm1214, %v1103, %v1230
        %v1232 = vsel %vm1216, %v1110, %v1231
        %v1233 = vsel %vm1218, %v1117, %v1232
        %v1234 = vsel %vm1206, %v1131, %v1124
        %v1235 = vsel %vm1208, %v1138, %v1234
        %v1236 = vsel %vm1210, %v1145, %v1235
        %v1237 = vsel %vm1212, %v1152, %v1236
        %v1238 = vsel %vm1214, %v1159, %v1237
        %v1239 = vsel %vm1216, %v1166, %v1238
        %v1240 = vsel %vm1218, %v1173, %v1239
        %1245 = vst [vmem:[%s164] sm:$0xff] %v1219
        %1246 = vst [vmem:[%s164 + $0x8] sm:$0xff] %v1226
        %1247 = vst [vmem:[%s164 + $0x10] sm:$0xff] %v1233
        %1248 = vst [vmem:[%s164 + $0x18] sm:$0xff] %v1240
        %s1249 = sand.u32 %s93, 1
        %s1250 = scalar_lea.sflag [#allocation3], %s1249
        %s1251 = sand.u32 %s93, 1
        %s1252 = smul.addr %s1251, 32
        %s1253 = scalar_lea.vmem [#allocation2], %s1252
        // Predicated region
        $region33: #{tpu_custom_call.1} parent=31 // pred_check
          %p1254 = pneg %p103
        $region34: #{tpu_custom_call.1} parent=31 // pred_check_branch
          %1256 = sbr.rel (%p1254) target = $region36
        $region35: #{tpu_custom_call.1} parent=31 // pred_region
          %s1257 = smul.u32 4, %s17
          %s1259 = ssub.s32 512, 512
          %1260 = vsyncadd %s1250, %s1259
          %s1261 = smul.addr %s1257, 128
          %s1262 = scalar_lea.hbm %s3, %s1261
          %s1263 = sshll.u32 %s1253, 4
          %s1264 = int_to_ptr.vmem [resolvable:$true] %s1263
          %1269 = dma.vmem_to_hbm [thread:$0]  %s1264, 512, %s1262, %s1250, 128, 128, 8
        $region36: #{tpu_custom_call.1} parent=31 // pred_fallthru
          _
      $region32: #{tpu_custom_call.1} parent=5 // pred_fallthru
        _
      %p1270 = scmp.le.s32.totalorder 2, %s12
      // Predicated region
      $region37: #{tpu_custom_call.1} parent=5 // pred_check
        %p1271 = pneg %p1270
      $region38: #{tpu_custom_call.1} parent=5 // pred_check_branch
        %1273 = sbr.rel (%p1271) target = $region40
      $region39: #{tpu_custom_call.1} parent=5 // pred_region
        %s1274 = ssub.s32 %s12, 2
        // Predicated region
        $region41: #{tpu_custom_call.1} parent=39 // pred_check
          %p1275 = pneg %p109
        $region42: #{tpu_custom_call.1} parent=39 // pred_check_branch
          %1277 = sbr.rel (%p1275) target = $region44
        $region43: #{tpu_custom_call.1} parent=39 // pred_region
          %s1278 = sand.u32 %s94, 1
          %s1279 = scalar_lea.sflag [#allocation3], %s1278
          %s1280 = sand.u32 %s94, 1
          %s1281 = smul.addr %s1280, 32
          %s1282 = scalar_lea.vmem [#allocation2], %s1281
          %1283 = dma.done %s1279, 512
        $region44: #{tpu_custom_call.1} parent=39 // pred_fallthru
          _
      $region40: #{tpu_custom_call.1} parent=5 // pred_fallthru
        _
    $region6: #{tpu_custom_call.1} parent=1 // loop_footer
      %s16 = sadd.s32 1, %s12
    $region7: #{tpu_custom_call.1} parent=1 // loop_footer_branch
      %11 = sbr.rel target = $region3
    $region8: #{tpu_custom_call.1} parent=1 // loop_exit
      _
    %1284 = vsyncpa [#allocation3], 1
    %s1285 = scalar_lea.sflag [#allocation3], 1
    %1286 = vsyncpa %s1285, 1

</llo_original>
